<compile_context>
chip_gen: v7x
topology: tpu7x:2x2x1
jax: 0.10.0
libtpu: 0.0.40
codegen_flags: <defaults>
</compile_context>

<pallas_src>
import jax
import jax.numpy as jnp
from jax.experimental import pallas as pl
from jax.experimental.pallas import tpu as pltpu


# ----------------------------------------------------------------------------
# Fused kernel: 3-NN inverse-distance interpolation + concat + MLP chain
# ----------------------------------------------------------------------------
def _make_fused_kernel(n_layers, has_p1, s_is_one, tile_n):
    """Build the fused interpolate + concat + MLP kernel body (trace-time flags)."""

    def kernel(*refs):
        idx = 0
        if not s_is_one:
            x1_ref = refs[idx]; idx += 1          # (1, 3, TN)
            x2t_ref = refs[idx]; idx += 1         # (1, S, 3)  pre-transposed xyz2
        if has_p1:
            p1_ref = refs[idx]; idx += 1          # (1, D1, TN)
        p2_ref = refs[idx]                        # (1, D2, S)   (or (1, D2, 1))
        w_refs = refs[idx + 1:-1]                 # folded layer weights / shifts
        o_ref = refs[-1]                          # (1, C_last, TN)

        p2 = p2_ref[0]
        d2 = p2.shape[0]

        if s_is_one:
            # points2.repeat(1, 1, N): lane-broadcast the single source point.
            interp = jnp.broadcast_to(p2.astype(jnp.float32), (d2, tile_n))
        else:
            x1 = x1_ref[0].astype(jnp.float32)    # (3, TN)
            x2t = x2t_ref[0].astype(jnp.float32)  # (S, 3)
            s = x2t.shape[0]

            # Pairwise squared distances, pure VPU broadcast form:
            # d[s, n] = sum_c (x2[c,s] - x1[c,n])^2   -> non-negative, no
            # transpose, no K=3 MXU matmul.
            d = None
            for c in range(x1.shape[0]):
                diff = x2t[:, c:c + 1] - x1[c:c + 1, :]      # (S, TN)
                d = diff * diff if d is None else d + diff * diff

            row = jax.lax.broadcasted_iota(jnp.int32, (s, tile_n), 0)
            big = jnp.float32(1e30)

            # 3 nearest neighbours via iterative masked min (ties -> lowest
            # index; equidistant neighbours get identical weights anyway).
            d_work = d
            recips = []
            onehots = []
            for _ in range(3):
                dmin = jnp.min(d_work, axis=0, keepdims=True)              # (1, TN)
                amin = jnp.min(jnp.where(d_work == dmin, row, s),
                               axis=0, keepdims=True)                      # (1, TN)
                oh = row == amin                                           # (S, TN)
                recips.append(1.0 / (dmin + 1e-8))
                onehots.append(oh)
                d_work = jnp.where(oh, big, d_work)

            inv_norm = 1.0 / (recips[0] + recips[1] + recips[2])           # (1, TN)
            wmat = (jnp.where(onehots[0], recips[0] * inv_norm, 0.0)
                    + jnp.where(onehots[1], recips[1] * inv_norm, 0.0)
                    + jnp.where(onehots[2], recips[2] * inv_norm, 0.0))    # (S, TN)

            # interpolated[d, n] = sum_s points2[d, s] * wmat[s, n]
            # (dense 3-sparse weight matmul; operands stay in their native
            #  dtype, accumulation in f32 on the MXU.)
            interp = jnp.dot(p2, wmat.astype(p2.dtype),
                             preferred_element_type=jnp.float32)           # (D2, TN)

        # ---------------- fused MLP chain (conv1x1 + folded BN + ReLU) -------
        wp = 0
        # Layer 0: the channel concat [points1, interpolated] is fused away by
        # splitting the weight along its input-channel axis.
        if has_p1:
            w0_p1 = w_refs[wp][...]; wp += 1      # (C0, D1)
        w0_int = w_refs[wp][...]; wp += 1         # (C0, D2)
        shift0 = w_refs[wp][...]; wp += 1         # (C0, 1)
        h = jnp.dot(w0_int, interp.astype(w0_int.dtype),
                    preferred_element_type=jnp.float32)
        if has_p1:
            h = h + jnp.dot(w0_p1, p1_ref[0],
                            preferred_element_type=jnp.float32)
        h = jnp.maximum(h + shift0.astype(jnp.float32), 0.0)

        for _ in range(1, n_layers):
            w = w_refs[wp][...]; wp += 1          # (Ci, Ci-1)
            sh = w_refs[wp][...]; wp += 1         # (Ci, 1)
            h = jnp.dot(w, h.astype(w.dtype), preferred_element_type=jnp.float32)
            h = jnp.maximum(h + sh.astype(jnp.float32), 0.0)

        o_ref[0] = h.astype(o_ref.dtype)

    return kernel


# ----------------------------------------------------------------------------
# Module forward (wrapper: padding, tiling, weight folding/splitting)
# ----------------------------------------------------------------------------
def pointnet_fp_forward(xyz1, xyz2, points1, points2, params, *, tile_n=None):
    B, C, N = xyz1.shape
    S = xyz2.shape[2]
    D2 = points2.shape[1]
    has_p1 = points1 is not None
    D1 = points1.shape[1] if has_p1 else 0
    s_is_one = (S == 1)
    n_layers = len(params)
    if n_layers == 0:
        raise ValueError("mlp must contain at least one layer")
    if not s_is_one and S < 3:
        raise ValueError("3-NN interpolation requires S >= 3 (or S == 1)")

    # Fold conv bias + eval-mode BatchNorm into one weight / shift per layer.
    # TODO(synk): training-mode BatchNorm (batch statistics) is not implemented.
    folded = []
    for (w, b, scale, shift) in params:
        w_f = (w * scale[:, None]).astype(w.dtype)
        s_f = (scale * b + shift).reshape(-1, 1).astype(jnp.float32)
        folded.append((w_f, s_f))
    c_last = folded[-1][0].shape[0]
    out_dtype = points2.dtype

    # Pad N to a lane-dense multiple of 128 and pick the N-tile size.
    n_pad = -(-N // 128) * 128
    if tile_n is None:
        # Biggest 128-multiple tile dividing n_pad, capped so the (S, TN)
        # intermediates stay comfortably inside scoped VMEM.
        cap = 512 if S <= 1024 else 256
        tile_n = next(t for t in (512, 256, 128) if t <= cap and n_pad % t == 0)
    TN = tile_n
    grid = (B, n_pad // TN)

    def pad_n(x):
        return x if x.shape[-1] == n_pad else jnp.pad(
            x, ((0, 0), (0, 0), (0, n_pad - x.shape[-1])))

    inputs, in_specs = [], []
    if not s_is_one:
        inputs.append(pad_n(xyz1))
        in_specs.append(pl.BlockSpec((1, C, TN), lambda b, n: (b, 0, n)))
        # Pre-transposed xyz2 -> (B, S, 3): per-channel source coordinates are
        # natural (S, 1) columns in-kernel (no in-kernel XLU transpose).
        inputs.append(jnp.transpose(xyz2, (0, 2, 1)))
        in_specs.append(pl.BlockSpec((1, S, C), lambda b, n: (b, 0, 0)))
    if has_p1:
        inputs.append(pad_n(points1))
        in_specs.append(pl.BlockSpec((1, D1, TN), lambda b, n: (b, 0, n)))
    inputs.append(points2)
    in_specs.append(pl.BlockSpec((1, D2, points2.shape[2]),
                                 lambda b, n: (b, 0, 0)))

    def add_const(arr):
        inputs.append(arr)
        in_specs.append(pl.BlockSpec(arr.shape, lambda b, n: (0, 0)))

    for li, (w_f, s_f) in enumerate(folded):
        if li == 0 and has_p1:
            add_const(w_f[:, :D1])     # multiplies points1
            add_const(w_f[:, D1:])     # multiplies interpolated features
        else:
            add_const(w_f)
        add_const(s_f)

    kernel = _make_fused_kernel(n_layers, has_p1, s_is_one, TN)
    out = pl.pallas_call(
        kernel,
        out_shape=jax.ShapeDtypeStruct((B, c_last, n_pad), out_dtype),
        grid=grid,
        in_specs=in_specs,
        out_specs=pl.BlockSpec((1, c_last, TN), lambda b, n: (b, 0, n)),
        compiler_params=pltpu.CompilerParams(
            dimension_semantics=("parallel", "parallel"),
            vmem_limit_bytes=48 * 1024 * 1024),
    )(*inputs)

    return out if n_pad == N else out[:, :, :N]


def init_params(key, init_in_channel, mlp, eps=1e-5):
    """Deterministic synthetic parameters for each PointwiseConv1D layer."""
    params = []
    in_c = init_in_channel
    for out_c in mlp:
        key, k1, k2 = jax.random.split(key, 3)
        w = jax.random.normal(k1, (out_c, in_c), jnp.float32) * 0.1
        b = jax.random.normal(k2, (out_c,), jnp.float32) * 0.1
        # BatchNorm1d eval-mode with default stats, expressed as scale/shift.
        gamma = jnp.ones((out_c,), jnp.float32)
        beta = jnp.zeros((out_c,), jnp.float32)
        running_mean = jnp.zeros((out_c,), jnp.float32)
        running_var = jnp.ones((out_c,), jnp.float32)
        scale = gamma / jnp.sqrt(running_var + eps)
        shift = beta - running_mean * scale
        params.append((w, b, scale, shift))
        in_c = out_c
    return params


# ----------------------------------------------------------------------------
# Pure-JAX reference (correctness check only)
# ----------------------------------------------------------------------------
def _reference_forward(xyz1, xyz2, points1, points2, params):
    B, _, N = xyz1.shape
    S = xyz2.shape[2]
    D2 = points2.shape[1]
    if S == 1:
        interp = jnp.broadcast_to(points2, (B, D2, N))
    else:
        diff = xyz1[:, :, :, None] - xyz2[:, :, None, :]          # (B, 3, N, S)
        d = jnp.sum(diff * diff, axis=1)                          # (B, N, S)
        neg_d, idxs = jax.lax.top_k(-d, 3)                        # (B, N, 3)
        dists = -neg_d
        dist_recip = 1.0 / (dists + 1e-8)
        norm = jnp.sum(dist_recip, axis=2, keepdims=True)
        weight = dist_recip / norm                                # (B, N, 3)
        a = jnp.take_along_axis(points2[:, :, None, :],
                                idxs[:, None, :, :], axis=3)      # (B, D2, N, 3)
        interp = jnp.sum(a * weight[:, None, :, :], axis=3)       # (B, D2, N)
    x = jnp.concatenate([points1, interp], axis=1) if points1 is not None else interp
    for (w, b, scale, shift) in params:
        y = jnp.einsum("oi,bin->bon", w, x) + b[None, :, None]
        y = y * scale[None, :, None] + shift[None, :, None]
        x = jnp.maximum(y, 0.0)
    return x


if __name__ == "__main__":
    key = jax.random.PRNGKey(0)
    B, N, S = 2, 16, 8
    D1, D2 = 16, 32
    mlp = [32, 16]

    k = jax.random.split(key, 5)
    xyz1 = jax.random.normal(k[0], (B, 3, N), jnp.float32)
    xyz2 = jax.random.normal(k[1], (B, 3, S), jnp.float32)
    points1 = jax.random.normal(k[2], (B, D1, N), jnp.float32)
    points2 = jax.random.normal(k[3], (B, D2, S), jnp.float32)
    params = init_params(k[4], D1 + D2, mlp)

    out = pointnet_fp_forward(xyz1, xyz2, points1, points2, params)
    out = jax.block_until_ready(out)
    assert out.shape == (B, mlp[-1], N), out.shape

    ref = _reference_forward(xyz1, xyz2, points1, points2, params)
    max_err = float(jnp.max(jnp.abs(out - ref)))
    assert jnp.allclose(out, ref, atol=1e-4, rtol=1e-4), max_err

    print("KERNEL_OK")
</pallas_src>

<mosaic_0001>
module attributes {stable_mosaic.version = 11 : i64} {
  func.func @kernel(%arg0: i32, %arg1: i32, %arg2: memref<1x3x128xf32, #tpu.memory_space<vmem>>, %arg3: memref<1x8x3xf32, #tpu.memory_space<vmem>>, %arg4: memref<1x16x128xf32, #tpu.memory_space<vmem>>, %arg5: memref<1x32x8xf32, #tpu.memory_space<vmem>>, %arg6: memref<32x16xf32, #tpu.memory_space<vmem>>, %arg7: memref<32x32xf32, #tpu.memory_space<vmem>>, %arg8: memref<32x1xf32, #tpu.memory_space<vmem>>, %arg9: memref<16x32xf32, #tpu.memory_space<vmem>>, %arg10: memref<16x1xf32, #tpu.memory_space<vmem>>, %arg11: memref<1x16x128xf32, #tpu.memory_space<vmem>>) attributes {dimension_semantics = [#tpu.dimension_semantics<parallel>, #tpu.dimension_semantics<parallel>], iteration_bounds = array<i64: 2, 1>, scalar_prefetch = 0 : i64, scratch_operands = 0 : i64, tpu.core_type = #tpu.core_type<tc>, window_params = [{transform_indices = @transform_0, window_bounds = array<i64: 1, 3, 128>}, {transform_indices = @transform_1, window_bounds = array<i64: 1, 8, 3>}, {transform_indices = @transform_2, window_bounds = array<i64: 1, 16, 128>}, {transform_indices = @transform_3, window_bounds = array<i64: 1, 32, 8>}, {pipeline_mode = #tpu.pipeline_mode<synchronous>, transform_indices = @transform_4, window_bounds = array<i64: 32, 16>}, {pipeline_mode = #tpu.pipeline_mode<synchronous>, transform_indices = @transform_5, window_bounds = array<i64: 32, 32>}, {pipeline_mode = #tpu.pipeline_mode<synchronous>, transform_indices = @transform_6, window_bounds = array<i64: 32, 1>}, {pipeline_mode = #tpu.pipeline_mode<synchronous>, transform_indices = @transform_7, window_bounds = array<i64: 16, 32>}, {pipeline_mode = #tpu.pipeline_mode<synchronous>, transform_indices = @transform_8, window_bounds = array<i64: 16, 1>}, {transform_indices = @transform_9, window_bounds = array<i64: 1, 16, 128>}]} {
    %c0 = arith.constant 0 : index
    %c0_0 = arith.constant 0 : index
    %c0_1 = arith.constant 0 : index
    %0 = vector.load %arg5[%c0, %c0_0, %c0_1] : memref<1x32x8xf32, #tpu.memory_space<vmem>>, vector<1x32x8xf32>
    %1 = vector.shape_cast %0 : vector<1x32x8xf32> to vector<32x8xf32>
    %c0_2 = arith.constant 0 : index
    %c0_3 = arith.constant 0 : index
    %c0_4 = arith.constant 0 : index
    %2 = vector.load %arg2[%c0_2, %c0_3, %c0_4] : memref<1x3x128xf32, #tpu.memory_space<vmem>>, vector<1x3x128xf32>
    %3 = vector.shape_cast %2 : vector<1x3x128xf32> to vector<3x128xf32>
    %c0_5 = arith.constant 0 : index
    %c0_6 = arith.constant 0 : index
    %c0_7 = arith.constant 0 : index
    %4 = vector.load %arg3[%c0_5, %c0_6, %c0_7] : memref<1x8x3xf32, #tpu.memory_space<vmem>>, vector<1x8x3xf32>
    %5 = vector.shape_cast %4 : vector<1x8x3xf32> to vector<8x3xf32>
    %6 = vector.extract_strided_slice %5 {offsets = [0, 0], sizes = [8, 1], strides = [1, 1]} : vector<8x3xf32> to vector<8x1xf32>
    %7 = vector.extract_strided_slice %3 {offsets = [0, 0], sizes = [1, 128], strides = [1, 1]} : vector<3x128xf32> to vector<1x128xf32>
    %8 = vector.broadcast %6 : vector<8x1xf32> to vector<8x128xf32>
    %9 = vector.broadcast %7 : vector<1x128xf32> to vector<8x128xf32>
    %10 = arith.subf %8, %9 : vector<8x128xf32>
    %11 = arith.mulf %10, %10 : vector<8x128xf32>
    %12 = vector.extract_strided_slice %5 {offsets = [0, 1], sizes = [8, 1], strides = [1, 1]} : vector<8x3xf32> to vector<8x1xf32>
    %13 = vector.extract_strided_slice %3 {offsets = [1, 0], sizes = [1, 128], strides = [1, 1]} : vector<3x128xf32> to vector<1x128xf32>
    %14 = vector.broadcast %12 : vector<8x1xf32> to vector<8x128xf32>
    %15 = vector.broadcast %13 : vector<1x128xf32> to vector<8x128xf32>
    %16 = arith.subf %14, %15 : vector<8x128xf32>
    %17 = arith.mulf %16, %16 : vector<8x128xf32>
    %18 = arith.addf %11, %17 : vector<8x128xf32>
    %19 = vector.extract_strided_slice %5 {offsets = [0, 2], sizes = [8, 1], strides = [1, 1]} : vector<8x3xf32> to vector<8x1xf32>
    %20 = vector.extract_strided_slice %3 {offsets = [2, 0], sizes = [1, 128], strides = [1, 1]} : vector<3x128xf32> to vector<1x128xf32>
    %21 = vector.broadcast %19 : vector<8x1xf32> to vector<8x128xf32>
    %22 = vector.broadcast %20 : vector<1x128xf32> to vector<8x128xf32>
    %23 = arith.subf %21, %22 : vector<8x128xf32>
    %24 = arith.mulf %23, %23 : vector<8x128xf32>
    %25 = arith.addf %18, %24 : vector<8x128xf32>
    %26 = tpu.iota {dimensions = array<i32: 0>} : vector<8x128xi32>
    %cst = arith.constant dense<0x7F800000> : vector<128xf32>
    %27 = vector.multi_reduction <minimumf>, %25, %cst [0] : vector<8x128xf32> to vector<128xf32>
    %28 = vector.shape_cast %27 : vector<128xf32> to vector<1x128xf32>
    %29 = vector.broadcast %28 : vector<1x128xf32> to vector<8x128xf32>
    %30 = arith.cmpf oeq, %25, %29 : vector<8x128xf32>
    %c8_i32 = arith.constant 8 : i32
    %31 = vector.broadcast %c8_i32 : i32 to vector<8x128xi32>
    %32 = arith.select %30, %26, %31 : vector<8x128xi1>, vector<8x128xi32>
    %cst_8 = arith.constant dense<2147483647> : vector<128xi32>
    %33 = vector.multi_reduction <minsi>, %32, %cst_8 [0] : vector<8x128xi32> to vector<128xi32>
    %34 = vector.shape_cast %33 : vector<128xi32> to vector<1x128xi32>
    %35 = vector.broadcast %34 : vector<1x128xi32> to vector<8x128xi32>
    %36 = arith.cmpi eq, %26, %35 : vector<8x128xi32>
    %cst_9 = arith.constant 9.99999993E-9 : f32
    %37 = vector.broadcast %cst_9 : f32 to vector<1x128xf32>
    %38 = arith.addf %28, %37 : vector<1x128xf32>
    %cst_10 = arith.constant 1.000000e+00 : f32
    %39 = vector.broadcast %cst_10 : f32 to vector<1x128xf32>
    %40 = arith.divf %39, %38 : vector<1x128xf32>
    %cst_11 = arith.constant 1.000000e+30 : f32
    %41 = vector.broadcast %cst_11 : f32 to vector<8x128xf32>
    %42 = arith.select %36, %41, %25 : vector<8x128xi1>, vector<8x128xf32>
    %cst_12 = arith.constant dense<0x7F800000> : vector<128xf32>
    %43 = vector.multi_reduction <minimumf>, %42, %cst_12 [0] : vector<8x128xf32> to vector<128xf32>
    %44 = vector.shape_cast %43 : vector<128xf32> to vector<1x128xf32>
    %45 = vector.broadcast %44 : vector<1x128xf32> to vector<8x128xf32>
    %46 = arith.cmpf oeq, %42, %45 : vector<8x128xf32>
    %c8_i32_13 = arith.constant 8 : i32
    %47 = vector.broadcast %c8_i32_13 : i32 to vector<8x128xi32>
    %48 = arith.select %46, %26, %47 : vector<8x128xi1>, vector<8x128xi32>
    %cst_14 = arith.constant dense<2147483647> : vector<128xi32>
    %49 = vector.multi_reduction <minsi>, %48, %cst_14 [0] : vector<8x128xi32> to vector<128xi32>
    %50 = vector.shape_cast %49 : vector<128xi32> to vector<1x128xi32>
    %51 = vector.broadcast %50 : vector<1x128xi32> to vector<8x128xi32>
    %52 = arith.cmpi eq, %26, %51 : vector<8x128xi32>
    %cst_15 = arith.constant 9.99999993E-9 : f32
    %53 = vector.broadcast %cst_15 : f32 to vector<1x128xf32>
    %54 = arith.addf %44, %53 : vector<1x128xf32>
    %cst_16 = arith.constant 1.000000e+00 : f32
    %55 = vector.broadcast %cst_16 : f32 to vector<1x128xf32>
    %56 = arith.divf %55, %54 : vector<1x128xf32>
    %cst_17 = arith.constant 1.000000e+30 : f32
    %57 = vector.broadcast %cst_17 : f32 to vector<8x128xf32>
    %58 = arith.select %52, %57, %42 : vector<8x128xi1>, vector<8x128xf32>
    %cst_18 = arith.constant dense<0x7F800000> : vector<128xf32>
    %59 = vector.multi_reduction <minimumf>, %58, %cst_18 [0] : vector<8x128xf32> to vector<128xf32>
    %60 = vector.shape_cast %59 : vector<128xf32> to vector<1x128xf32>
    %61 = vector.broadcast %60 : vector<1x128xf32> to vector<8x128xf32>
    %62 = arith.cmpf oeq, %58, %61 : vector<8x128xf32>
    %c8_i32_19 = arith.constant 8 : i32
    %63 = vector.broadcast %c8_i32_19 : i32 to vector<8x128xi32>
    %64 = arith.select %62, %26, %63 : vector<8x128xi1>, vector<8x128xi32>
    %cst_20 = arith.constant dense<2147483647> : vector<128xi32>
    %65 = vector.multi_reduction <minsi>, %64, %cst_20 [0] : vector<8x128xi32> to vector<128xi32>
    %66 = vector.shape_cast %65 : vector<128xi32> to vector<1x128xi32>
    %67 = vector.broadcast %66 : vector<1x128xi32> to vector<8x128xi32>
    %68 = arith.cmpi eq, %26, %67 : vector<8x128xi32>
    %cst_21 = arith.constant 9.99999993E-9 : f32
    %69 = vector.broadcast %cst_21 : f32 to vector<1x128xf32>
    %70 = arith.addf %60, %69 : vector<1x128xf32>
    %cst_22 = arith.constant 1.000000e+00 : f32
    %71 = vector.broadcast %cst_22 : f32 to vector<1x128xf32>
    %72 = arith.divf %71, %70 : vector<1x128xf32>
    %73 = arith.addf %40, %56 : vector<1x128xf32>
    %74 = arith.addf %73, %72 : vector<1x128xf32>
    %cst_23 = arith.constant 1.000000e+00 : f32
    %75 = vector.broadcast %cst_23 : f32 to vector<1x128xf32>
    %76 = arith.divf %75, %74 : vector<1x128xf32>
    %77 = arith.mulf %40, %76 : vector<1x128xf32>
    %cst_24 = arith.constant 0.000000e+00 : f32
    %78 = vector.shape_cast %77 : vector<1x128xf32> to vector<1x128xf32>
    %79 = vector.broadcast %78 : vector<1x128xf32> to vector<8x128xf32>
    %80 = vector.broadcast %cst_24 : f32 to vector<8x128xf32>
    %81 = arith.select %36, %79, %80 : vector<8x128xi1>, vector<8x128xf32>
    %82 = arith.mulf %56, %76 : vector<1x128xf32>
    %cst_25 = arith.constant 0.000000e+00 : f32
    %83 = vector.shape_cast %82 : vector<1x128xf32> to vector<1x128xf32>
    %84 = vector.broadcast %83 : vector<1x128xf32> to vector<8x128xf32>
    %85 = vector.broadcast %cst_25 : f32 to vector<8x128xf32>
    %86 = arith.select %52, %84, %85 : vector<8x128xi1>, vector<8x128xf32>
    %87 = arith.addf %81, %86 : vector<8x128xf32>
    %88 = arith.mulf %72, %76 : vector<1x128xf32>
    %cst_26 = arith.constant 0.000000e+00 : f32
    %89 = vector.shape_cast %88 : vector<1x128xf32> to vector<1x128xf32>
    %90 = vector.broadcast %89 : vector<1x128xf32> to vector<8x128xf32>
    %91 = vector.broadcast %cst_26 : f32 to vector<8x128xf32>
    %92 = arith.select %68, %90, %91 : vector<8x128xi1>, vector<8x128xf32>
    %93 = arith.addf %87, %92 : vector<8x128xf32>
    %cst_27 = arith.constant dense<0.000000e+00> : vector<32x128xf32>
    %94 = tpu.matmul %1, %93, %cst_27 {dimension_numbers = #tpu.dot_dimension_numbers<[1], [0], [0], [1], [0, 0, 1, 1], [], []>} : vector<32x8xf32>, vector<8x128xf32>, vector<32x128xf32> -> vector<32x128xf32>
    %c0_28 = arith.constant 0 : index
    %c0_29 = arith.constant 0 : index
    %95 = vector.load %arg6[%c0_28, %c0_29] : memref<32x16xf32, #tpu.memory_space<vmem>>, vector<32x16xf32>
    %c0_30 = arith.constant 0 : index
    %c0_31 = arith.constant 0 : index
    %96 = vector.load %arg7[%c0_30, %c0_31] : memref<32x32xf32, #tpu.memory_space<vmem>>, vector<32x32xf32>
    %c0_32 = arith.constant 0 : index
    %c0_33 = arith.constant 0 : index
    %97 = vector.load %arg8[%c0_32, %c0_33] : memref<32x1xf32, #tpu.memory_space<vmem>>, vector<32x1xf32>
    %cst_34 = arith.constant dense<0.000000e+00> : vector<32x128xf32>
    %98 = tpu.matmul %96, %94, %cst_34 {dimension_numbers = #tpu.dot_dimension_numbers<[1], [0], [0], [1], [0, 0, 1, 1], [], []>} : vector<32x32xf32>, vector<32x128xf32>, vector<32x128xf32> -> vector<32x128xf32>
    %c0_35 = arith.constant 0 : index
    %c0_36 = arith.constant 0 : index
    %c0_37 = arith.constant 0 : index
    %99 = vector.load %arg4[%c0_35, %c0_36, %c0_37] : memref<1x16x128xf32, #tpu.memory_space<vmem>>, vector<1x16x128xf32>
    %100 = vector.shape_cast %99 : vector<1x16x128xf32> to vector<16x128xf32>
    %cst_38 = arith.constant dense<0.000000e+00> : vector<32x128xf32>
    %101 = tpu.matmul %95, %100, %cst_38 {dimension_numbers = #tpu.dot_dimension_numbers<[1], [0], [0], [1], [0, 0, 1, 1], [], []>} : vector<32x16xf32>, vector<16x128xf32>, vector<32x128xf32> -> vector<32x128xf32>
    %102 = arith.addf %98, %101 : vector<32x128xf32>
    %103 = vector.broadcast %97 : vector<32x1xf32> to vector<32x128xf32>
    %104 = arith.addf %102, %103 : vector<32x128xf32>
    %cst_39 = arith.constant 0.000000e+00 : f32
    %105 = vector.broadcast %cst_39 : f32 to vector<32x128xf32>
    %106 = arith.maximumf %104, %105 : vector<32x128xf32>
    %c0_40 = arith.constant 0 : index
    %c0_41 = arith.constant 0 : index
    %107 = vector.load %arg9[%c0_40, %c0_41] : memref<16x32xf32, #tpu.memory_space<vmem>>, vector<16x32xf32>
    %c0_42 = arith.constant 0 : index
    %c0_43 = arith.constant 0 : index
    %108 = vector.load %arg10[%c0_42, %c0_43] : memref<16x1xf32, #tpu.memory_space<vmem>>, vector<16x1xf32>
    %cst_44 = arith.constant dense<0.000000e+00> : vector<16x128xf32>
    %109 = tpu.matmul %107, %106, %cst_44 {dimension_numbers = #tpu.dot_dimension_numbers<[1], [0], [0], [1], [0, 0, 1, 1], [], []>} : vector<16x32xf32>, vector<32x128xf32>, vector<16x128xf32> -> vector<16x128xf32>
    %110 = vector.broadcast %108 : vector<16x1xf32> to vector<16x128xf32>
    %111 = arith.addf %109, %110 : vector<16x128xf32>
    %cst_45 = arith.constant 0.000000e+00 : f32
    %112 = vector.broadcast %cst_45 : f32 to vector<16x128xf32>
    %113 = arith.maximumf %111, %112 : vector<16x128xf32>
    %c0_46 = arith.constant 0 : index
    %c0_47 = arith.constant 0 : index
    %c0_48 = arith.constant 0 : index
    %114 = vector.load %arg11[%c0_46, %c0_47, %c0_48] : memref<1x16x128xf32, #tpu.memory_space<vmem>>, vector<1x16x128xf32>
    %115 = vector.shape_cast %114 : vector<1x16x128xf32> to vector<16x128xf32>
    %116 = vector.shape_cast %113 : vector<16x128xf32> to vector<1x16x128xf32>
    tpu.vector_store %arg11[%c0_46, %c0_47, %c0_48], %116 {strides = array<i32>} : memref<1x16x128xf32, #tpu.memory_space<vmem>>, vector<1x16x128xf32>,
    return
  }
  func.func @transform_0(%arg0: i32, %arg1: i32) -> (i32, i32, i32) {
    %c0_i32 = arith.constant 0 : i32
    %c0_i32_0 = arith.constant 0 : i32
    return %arg0, %c0_i32, %arg1 : i32, i32, i32
  }
  func.func @transform_1(%arg0: i32, %arg1: i32) -> (i32, i32, i32) {
    %c0_i32 = arith.constant 0 : i32
    %c0_i32_0 = arith.constant 0 : i32
    %c0_i32_1 = arith.constant 0 : i32
    return %arg0, %c0_i32, %c0_i32_0 : i32, i32, i32
  }
  func.func @transform_2(%arg0: i32, %arg1: i32) -> (i32, i32, i32) {
    %c0_i32 = arith.constant 0 : i32
    %c0_i32_0 = arith.constant 0 : i32
    return %arg0, %c0_i32, %arg1 : i32, i32, i32
  }
  func.func @transform_3(%arg0: i32, %arg1: i32) -> (i32, i32, i32) {
    %c0_i32 = arith.constant 0 : i32
    %c0_i32_0 = arith.constant 0 : i32
    %c0_i32_1 = arith.constant 0 : i32
    return %arg0, %c0_i32, %c0_i32_0 : i32, i32, i32
  }
  func.func @transform_4(%arg0: i32, %arg1: i32) -> (i32, i32) {
    %c0_i32 = arith.constant 0 : i32
    %c0_i32_0 = arith.constant 0 : i32
    %c0_i32_1 = arith.constant 0 : i32
    return %c0_i32, %c0_i32_0 : i32, i32
  }
  func.func @transform_5(%arg0: i32, %arg1: i32) -> (i32, i32) {
    %c0_i32 = arith.constant 0 : i32
    %c0_i32_0 = arith.constant 0 : i32
    %c0_i32_1 = arith.constant 0 : i32
    return %c0_i32, %c0_i32_0 : i32, i32
  }
  func.func @transform_6(%arg0: i32, %arg1: i32) -> (i32, i32) {
    %c0_i32 = arith.constant 0 : i32
    %c0_i32_0 = arith.constant 0 : i32
    %c0_i32_1 = arith.constant 0 : i32
    return %c0_i32, %c0_i32_0 : i32, i32
  }
  func.func @transform_7(%arg0: i32, %arg1: i32) -> (i32, i32) {
    %c0_i32 = arith.constant 0 : i32
    %c0_i32_0 = arith.constant 0 : i32
    %c0_i32_1 = arith.constant 0 : i32
    return %c0_i32, %c0_i32_0 : i32, i32
  }
  func.func @transform_8(%arg0: i32, %arg1: i32) -> (i32, i32) {
    %c0_i32 = arith.constant 0 : i32
    %c0_i32_0 = arith.constant 0 : i32
    %c0_i32_1 = arith.constant 0 : i32
    return %c0_i32, %c0_i32_0 : i32, i32
  }
  func.func @transform_9(%arg0: i32, %arg1: i32) -> (i32, i32, i32) {
    %c0_i32 = arith.constant 0 : i32
    %c0_i32_0 = arith.constant 0 : i32
    return %arg0, %c0_i32, %arg1 : i32, i32, i32
  }
}

</mosaic_0001>

<llo_original>
// kernel: tpu_custom_call.1
$region0: #{tpu_custom_call.1}
  #allocation0 [shape = 'u32[]', space=smem, size = 0x4, offset = 0x4, fixed_abs, tag = 'smem constant byte address 0x4 - core index']
  #allocation1 [shape = 'u32[144,128]{1,0:T(1,128)}', space=vmem, size = 0x12000, scoped, tag = 'internal scratch']
  %s0 = inlined_call_operand.vmem [shape: f32[2,3,128], index: 0, kind: input, shape index: {}]
  %s1 = inlined_call_operand.vmem [shape: f32[2,8,3], index: 1, kind: input, shape index: {}]
  %s2 = inlined_call_operand.vmem [shape: f32[2,16,128], index: 2, kind: input, shape index: {}]
  %s3 = inlined_call_operand.vmem [shape: f32[2,32,8], index: 3, kind: input, shape index: {}]
  %s4 = inlined_call_operand.vmem [shape: f32[32,16], index: 4, kind: input, shape index: {}]
  %s5 = inlined_call_operand.vmem [shape: f32[32,32], index: 5, kind: input, shape index: {}]
  %s6 = inlined_call_operand.vmem [shape: f32[32,1], index: 6, kind: input, shape index: {}]
  %s7 = inlined_call_operand.vmem [shape: f32[16,32], index: 7, kind: input, shape index: {}]
  %s8 = inlined_call_operand.vmem [shape: f32[16,1], index: 8, kind: input, shape index: {}]
  %s9 = inlined_call_operand.hbm [shape: f32[2,16,128], index: 9, kind: output, shape index: {}]
  %s10 = sld [smem:[#allocation0]]
  $region69: #{tpu_custom_call.1} parent=0
    _
  %s12 = ssub.s32 1, %s10
  %s13 = scalar_select 0, %s12, %s10
  $region1: #{tpu_custom_call.1} parent=0
    #allocation2 [shape = 'u8[16384]{0}', space=vmem, size = 0x4000, scoped, tag = 'output window, operand 0']
    #allocation3 [shape = 's32[2]{0}', space=sflag, size = 0x8, scoped, tag = 'scoped memory for tpu_custom_call.1']
    %14 = vsyncpa [#allocation3], 0
    %s15 = scalar_lea.sflag [#allocation3], 1
    %16 = vsyncpa %s15, 0
    loop: start=0, step=1, limit=4
    $region2: #{tpu_custom_call.1} parent=1 // loop_pre_header
      _
    $region3: #{tpu_custom_call.1} parent=1 // loop_header
      %s18 = sphi 0, %s22
      %p19 = scmp.ge.s32.totalorder %s18, 4
      %s25 = sphi 0, %s37
      %s26 = sphi 0, %s33
      %s27 = sphi 0, %s25
      %s28 = sphi 0, %s26
      %s29 = sphi 0, %s27
      %s30 = sphi 0, %s28
      %s42 = sphi 0, %s44
      %s45 = sphi 0, %s42
      %s46 = sphi 0, %s45
      %s62 = sphi 0, %s46
      %s68 = sphi 0, %s70
      %s71 = sphi 0, %s68
      %s72 = sphi 0, %s71
      %s88 = sphi 0, %s72
      %s96 = sphi 0, %s98
      %s99 = sphi 0, %s96
      %s100 = sphi 0, %s99
      %s116 = sphi 0, %s100
      %s122 = sphi 0, %s124
      %s125 = sphi 0, %s122
      %s126 = sphi 0, %s125
      %s142 = sphi 0, %s126
      %s146 = sphi 0, %s146
      %s148 = sphi 0, %s146
      %s149 = sphi 0, %s148
      %s163 = sphi 0, %s149
      %s167 = sphi 0, %s167
      %s169 = sphi 0, %s167
      %s170 = sphi 0, %s169
      %s184 = sphi 0, %s170
      %s188 = sphi 0, %s188
      %s190 = sphi 0, %s188
      %s191 = sphi 0, %s190
      %s205 = sphi 0, %s191
      %s209 = sphi 0, %s209
      %s211 = sphi 0, %s209
      %s212 = sphi 0, %s211
      %s226 = sphi 0, %s212
      %s230 = sphi 0, %s230
      %s232 = sphi 0, %s230
      %s233 = sphi 0, %s232
      %s247 = sphi 0, %s233
      %s255 = sphi 0, %s257
      %s258 = sphi 0, %s255
      %s259 = sphi 0, %s258
      %s275 = sphi 0, %s259
    $region4: #{tpu_custom_call.1} parent=1 // loop_header_branch
      %21 = sbr.rel (%p19) target = $region8
    $region5: #{tpu_custom_call.1} parent=1 // loop_body
      %s23 = ssub.s32 %s18, 1
      %s24 = ssub.s32 %s18, 2
      %s31 = sadd.s32 1, %s26
      %p32 = scmp.ge.s32.totalorder %s31, 1
      %s33 = scalar_select %p32, 0, %s31
      %s34 = sadd.s32 1, %s25
      %s35 = scalar_select %p32, %s34, %s25
      %p36 = scmp.ge.s32.totalorder %s35, 2
      %s37 = scalar_select %p36, 0, %s35
      %s38 = ssub.s32 %s25, %s37
      %s39 = ssub.s32 %s26, %s33
      %s40 = sor.u32 %s38, %s39
      %p41 = scmp.eq.s32.totalorder %s40, 0
      %s43 = sadd.s32 %s42, 1
      %s44 = scalar_select %p41, %s42, %s43
      %p47 = pneg %p41
      %p48 = scmp.eq.s32.totalorder %s18, 1
      %p49 = por %p47, %p48
      %p50 = scmp.ne.s32.totalorder %s42, %s45
      %p51 = scmp.eq.s32.totalorder %s18, 0
      %p52 = por %p50, %p51
      %p53 = scmp.ne.s32.totalorder %s42, %s45
      %p54 = scmp.eq.s32.totalorder %s23, 1
      %p55 = por %p53, %p54
      %p56 = scmp.ne.s32.totalorder %s45, %s46
      %p57 = scmp.eq.s32.totalorder %s23, 0
      %p58 = por %p56, %p57
      %p59 = scmp.ne.s32.totalorder %s45, %s46
      %p60 = scmp.eq.s32.totalorder %s24, 1
      %p61 = por %p59, %p60
      %p63 = scmp.ne.s32.totalorder %s46, %s62
      %p64 = scmp.eq.s32.totalorder %s24, 0
      %p65 = por %p63, %p64
      %s66 = ssub.s32 %s25, %s37
      %p67 = scmp.eq.s32.totalorder %s66, 0
      %s69 = sadd.s32 %s68, 1
      %s70 = scalar_select %p67, %s68, %s69
      %p73 = pneg %p67
      %p74 = scmp.eq.s32.totalorder %s18, 1
      %p75 = por %p73, %p74
      %p76 = scmp.ne.s32.totalorder %s68, %s71
      %p77 = scmp.eq.s32.totalorder %s18, 0
      %p78 = por %p76, %p77
      %p79 = scmp.ne.s32.totalorder %s68, %s71
      %p80 = scmp.eq.s32.totalorder %s23, 1
      %p81 = por %p79, %p80
      %p82 = scmp.ne.s32.totalorder %s71, %s72
      %p83 = scmp.eq.s32.totalorder %s23, 0
      %p84 = por %p82, %p83
      %p85 = scmp.ne.s32.totalorder %s71, %s72
      %p86 = scmp.eq.s32.totalorder %s24, 1
      %p87 = por %p85, %p86
      %p89 = scmp.ne.s32.totalorder %s72, %s88
      %p90 = scmp.eq.s32.totalorder %s24, 0
      %p91 = por %p89, %p90
      %s92 = ssub.s32 %s25, %s37
      %s93 = ssub.s32 %s26, %s33
      %s94 = sor.u32 %s92, %s93
      %p95 = scmp.eq.s32.totalorder %s94, 0
      %s97 = sadd.s32 %s96, 1
      %s98 = scalar_select %p95, %s96, %s97
      %p101 = pneg %p95
      %p102 = scmp.eq.s32.totalorder %s18, 1
      %p103 = por %p101, %p102
      %p104 = scmp.ne.s32.totalorder %s96, %s99
      %p105 = scmp.eq.s32.totalorder %s18, 0
      %p106 = por %p104, %p105
      %p107 = scmp.ne.s32.totalorder %s96, %s99
      %p108 = scmp.eq.s32.totalorder %s23, 1
      %p109 = por %p107, %p108
      %p110 = scmp.ne.s32.totalorder %s99, %s100
      %p111 = scmp.eq.s32.totalorder %s23, 0
      %p112 = por %p110, %p111
      %p113 = scmp.ne.s32.totalorder %s99, %s100
      %p114 = scmp.eq.s32.totalorder %s24, 1
      %p115 = por %p113, %p114
      %p117 = scmp.ne.s32.totalorder %s100, %s116
      %p118 = scmp.eq.s32.totalorder %s24, 0
      %p119 = por %p117, %p118
      %s120 = ssub.s32 %s25, %s37
      %p121 = scmp.eq.s32.totalorder %s120, 0
      %s123 = sadd.s32 %s122, 1
      %s124 = scalar_select %p121, %s122, %s123
      %p127 = pneg %p121
      %p128 = scmp.eq.s32.totalorder %s18, 1
      %p129 = por %p127, %p128
      %p130 = scmp.ne.s32.totalorder %s122, %s125
      %p131 = scmp.eq.s32.totalorder %s18, 0
      %p132 = por %p130, %p131
      %p133 = scmp.ne.s32.totalorder %s122, %s125
      %p134 = scmp.eq.s32.totalorder %s23, 1
      %p135 = por %p133, %p134
      %p136 = scmp.ne.s32.totalorder %s125, %s126
      %p137 = scmp.eq.s32.totalorder %s23, 0
      %p138 = por %p136, %p137
      %p139 = scmp.ne.s32.totalorder %s125, %s126
      %p140 = scmp.eq.s32.totalorder %s24, 1
      %p141 = por %p139, %p140
      %p143 = scmp.ne.s32.totalorder %s126, %s142
      %p144 = scmp.eq.s32.totalorder %s24, 0
      %p145 = por %p143, %p144
      %s147 = sadd.s32 %s146, 1
      %p150 = scmp.eq.s32.totalorder %s18, 1
      %p151 = scmp.ne.s32.totalorder %s146, %s148
      %p152 = scmp.eq.s32.totalorder %s18, 0
      %p153 = por %p151, %p152
      %p154 = scmp.ne.s32.totalorder %s146, %s148
      %p155 = scmp.eq.s32.totalorder %s23, 1
      %p156 = por %p154, %p155
      %p157 = scmp.ne.s32.totalorder %s148, %s149
      %p158 = scmp.eq.s32.totalorder %s23, 0
      %p159 = por %p157, %p158
      %p160 = scmp.ne.s32.totalorder %s148, %s149
      %p161 = scmp.eq.s32.totalorder %s24, 1
      %p162 = por %p160, %p161
      %p164 = scmp.ne.s32.totalorder %s149, %s163
      %p165 = scmp.eq.s32.totalorder %s24, 0
      %p166 = por %p164, %p165
      %s168 = sadd.s32 %s167, 1
      %p171 = scmp.eq.s32.totalorder %s18, 1
      %p172 = scmp.ne.s32.totalorder %s167, %s169
      %p173 = scmp.eq.s32.totalorder %s18, 0
      %p174 = por %p172, %p173
      %p175 = scmp.ne.s32.totalorder %s167, %s169
      %p176 = scmp.eq.s32.totalorder %s23, 1
      %p177 = por %p175, %p176
      %p178 = scmp.ne.s32.totalorder %s169, %s170
      %p179 = scmp.eq.s32.totalorder %s23, 0
      %p180 = por %p178, %p179
      %p181 = scmp.ne.s32.totalorder %s169, %s170
      %p182 = scmp.eq.s32.totalorder %s24, 1
      %p183 = por %p181, %p182
      %p185 = scmp.ne.s32.totalorder %s170, %s184
      %p186 = scmp.eq.s32.totalorder %s24, 0
      %p187 = por %p185, %p186
      %s189 = sadd.s32 %s188, 1
      %p192 = scmp.eq.s32.totalorder %s18, 1
      %p193 = scmp.ne.s32.totalorder %s188, %s190
      %p194 = scmp.eq.s32.totalorder %s18, 0
      %p195 = por %p193, %p194
      %p196 = scmp.ne.s32.totalorder %s188, %s190
      %p197 = scmp.eq.s32.totalorder %s23, 1
      %p198 = por %p196, %p197
      %p199 = scmp.ne.s32.totalorder %s190, %s191
      %p200 = scmp.eq.s32.totalorder %s23, 0
      %p201 = por %p199, %p200
      %p202 = scmp.ne.s32.totalorder %s190, %s191
      %p203 = scmp.eq.s32.totalorder %s24, 1
      %p204 = por %p202, %p203
      %p206 = scmp.ne.s32.totalorder %s191, %s205
      %p207 = scmp.eq.s32.totalorder %s24, 0
      %p208 = por %p206, %p207
      %s210 = sadd.s32 %s209, 1
      %p213 = scmp.eq.s32.totalorder %s18, 1
      %p214 = scmp.ne.s32.totalorder %s209, %s211
      %p215 = scmp.eq.s32.totalorder %s18, 0
      %p216 = por %p214, %p215
      %p217 = scmp.ne.s32.totalorder %s209, %s211
      %p218 = scmp.eq.s32.totalorder %s23, 1
      %p219 = por %p217, %p218
      %p220 = scmp.ne.s32.totalorder %s211, %s212
      %p221 = scmp.eq.s32.totalorder %s23, 0
      %p222 = por %p220, %p221
      %p223 = scmp.ne.s32.totalorder %s211, %s212
      %p224 = scmp.eq.s32.totalorder %s24, 1
      %p225 = por %p223, %p224
      %p227 = scmp.ne.s32.totalorder %s212, %s226
      %p228 = scmp.eq.s32.totalorder %s24, 0
      %p229 = por %p227, %p228
      %s231 = sadd.s32 %s230, 1
      %p234 = scmp.eq.s32.totalorder %s18, 1
      %p235 = scmp.ne.s32.totalorder %s230, %s232
      %p236 = scmp.eq.s32.totalorder %s18, 0
      %p237 = por %p235, %p236
      %p238 = scmp.ne.s32.totalorder %s230, %s232
      %p239 = scmp.eq.s32.totalorder %s23, 1
      %p240 = por %p238, %p239
      %p241 = scmp.ne.s32.totalorder %s232, %s233
      %p242 = scmp.eq.s32.totalorder %s23, 0
      %p243 = por %p241, %p242
      %p244 = scmp.ne.s32.totalorder %s232, %s233
      %p245 = scmp.eq.s32.totalorder %s24, 1
      %p246 = por %p244, %p245
      %p248 = scmp.ne.s32.totalorder %s233, %s247
      %p249 = scmp.eq.s32.totalorder %s24, 0
      %p250 = por %p248, %p249
      %s251 = ssub.s32 %s25, %s37
      %s252 = ssub.s32 %s26, %s33
      %s253 = sor.u32 %s251, %s252
      %p254 = scmp.eq.s32.totalorder %s253, 0
      %s256 = sadd.s32 %s255, 1
      %s257 = scalar_select %p254, %s255, %s256
      %p260 = pneg %p254
      %p261 = scmp.eq.s32.totalorder %s18, 1
      %p262 = por %p260, %p261
      %p263 = scmp.ne.s32.totalorder %s255, %s258
      %p264 = scmp.eq.s32.totalorder %s18, 0
      %p265 = por %p263, %p264
      %p266 = scmp.ne.s32.totalorder %s255, %s258
      %p267 = scmp.eq.s32.totalorder %s23, 1
      %p268 = por %p266, %p267
      %p269 = scmp.ne.s32.totalorder %s258, %s259
      %p270 = scmp.eq.s32.totalorder %s23, 0
      %p271 = por %p269, %p270
      %p272 = scmp.ne.s32.totalorder %s258, %s259
      %p273 = scmp.eq.s32.totalorder %s24, 1
      %p274 = por %p272, %p273
      %p276 = scmp.ne.s32.totalorder %s259, %s275
      %p277 = scmp.eq.s32.totalorder %s24, 0
      %p278 = por %p276, %p277
      %p279 = scmp.le.s32.totalorder 1, %s18
      %p280 = scmp.lt.s32.totalorder %s18, 3
      %p281 = pnand %p279, %p280
      %p282 = pneg %p281
      // Predicated region
      $region9: #{tpu_custom_call.1} parent=5 // pred_check
        _
      $region10: #{tpu_custom_call.1} parent=5 // pred_check_branch
        %284 = sbr.rel (%p281) target = $region12
      $region11: #{tpu_custom_call.1} parent=5 // pred_region
        %s285 = ssub.s32 %s18, 1
        // Predicated region
        $region13: #{tpu_custom_call.1} parent=11 // pred_check
          %p286 = pneg %p159
        $region14: #{tpu_custom_call.1} parent=11 // pred_check_branch
          %288 = sbr.rel (%p286) target = $region16
        $region15: #{tpu_custom_call.1} parent=11 // pred_region
          _
        $region16: #{tpu_custom_call.1} parent=11 // pred_fallthru
          _
        // Predicated region
        $region17: #{tpu_custom_call.1} parent=11 // pred_check
          %p289 = pneg %p180
        $region18: #{tpu_custom_call.1} parent=11 // pred_check_branch
          %291 = sbr.rel (%p289) target = $region20
        $region19: #{tpu_custom_call.1} parent=11 // pred_region
          _
        $region20: #{tpu_custom_call.1} parent=11 // pred_fallthru
          _
        // Predicated region
        $region21: #{tpu_custom_call.1} parent=11 // pred_check
          %p292 = pneg %p201
        $region22: #{tpu_custom_call.1} parent=11 // pred_check_branch
          %294 = sbr.rel (%p292) target = $region24
        $region23: #{tpu_custom_call.1} parent=11 // pred_region
          _
        $region24: #{tpu_custom_call.1} parent=11 // pred_fallthru
          _
        // Predicated region
        $region25: #{tpu_custom_call.1} parent=11 // pred_check
          %p295 = pneg %p222
        $region26: #{tpu_custom_call.1} parent=11 // pred_check_branch
          %297 = sbr.rel (%p295) target = $region28
        $region27: #{tpu_custom_call.1} parent=11 // pred_region
          _
        $region28: #{tpu_custom_call.1} parent=11 // pred_fallthru
          _
        // Predicated region
        $region29: #{tpu_custom_call.1} parent=11 // pred_check
          %p298 = pneg %p243
        $region30: #{tpu_custom_call.1} parent=11 // pred_check_branch
          %300 = sbr.rel (%p298) target = $region32
        $region31: #{tpu_custom_call.1} parent=11 // pred_region
          _
        $region32: #{tpu_custom_call.1} parent=11 // pred_fallthru
          _
      $region12: #{tpu_custom_call.1} parent=5 // pred_fallthru
        _
      %p301 = scmp.lt.s32.totalorder %s18, 2
      // Predicated region
      $region33: #{tpu_custom_call.1} parent=5 // pred_check
        %p302 = pneg %p301
      $region34: #{tpu_custom_call.1} parent=5 // pred_check_branch
        %304 = sbr.rel (%p302) target = $region36
      $region35: #{tpu_custom_call.1} parent=5 // pred_region
        // Predicated region
        $region37: #{tpu_custom_call.1} parent=35 // pred_check
          %p305 = pneg %p52
        $region38: #{tpu_custom_call.1} parent=35 // pred_check_branch
          %307 = sbr.rel (%p305) target = $region40
        $region39: #{tpu_custom_call.1} parent=35 // pred_region
          %p308 = scmp.lt.s32.totalorder %s25, 1
          %s309 = scalar_select %p308, %s25, 1
          %p310 = scmp.lt.s32.totalorder %s26, 0
          %s311 = scalar_select %p310, %s26, 0
          %s312 = sadd.s32 %s311, %s309
          %s313 = smul.addr %s312, 4
          %s314 = scalar_lea.vmem %s0, %s313
        $region40: #{tpu_custom_call.1} parent=35 // pred_fallthru
          _
        // Predicated region
        $region41: #{tpu_custom_call.1} parent=35 // pred_check
          %p315 = pneg %p78
        $region42: #{tpu_custom_call.1} parent=35 // pred_check_branch
          %317 = sbr.rel (%p315) target = $region44
        $region43: #{tpu_custom_call.1} parent=35 // pred_region
          %p318 = scmp.lt.s32.totalorder %s25, 1
          %s319 = scalar_select %p318, %s25, 1
          %s320 = smul.addr %s319, 8
          %s321 = scalar_lea.vmem %s1, %s320
        $region44: #{tpu_custom_call.1} parent=35 // pred_fallthru
          _
        // Predicated region
        $region45: #{tpu_custom_call.1} parent=35 // pred_check
          %p322 = pneg %p106
        $region46: #{tpu_custom_call.1} parent=35 // pred_check_branch
          %324 = sbr.rel (%p322) target = $region48
        $region47: #{tpu_custom_call.1} parent=35 // pred_region
          %p325 = scmp.lt.s32.totalorder %s25, 1
          %s326 = scalar_select %p325, %s25, 1
          %p327 = scmp.lt.s32.totalorder %s26, 0
          %s328 = scalar_select %p327, %s26, 0
          %s329 = smul.addr %s326, 2
          %s330 = sadd.s32 %s328, %s329
          %s331 = smul.addr %s330, 8
          %s332 = scalar_lea.vmem %s2, %s331
        $region48: #{tpu_custom_call.1} parent=35 // pred_fallthru
          _
        // Predicated region
        $region49: #{tpu_custom_call.1} parent=35 // pred_check
          %p333 = pneg %p132
        $region50: #{tpu_custom_call.1} parent=35 // pred_check_branch
          %335 = sbr.rel (%p333) target = $region52
        $region51: #{tpu_custom_call.1} parent=35 // pred_region
          %p336 = scmp.lt.s32.totalorder %s25, 1
          %s337 = scalar_select %p336, %s25, 1
          %s338 = smul.addr %s337, 4
          %s339 = smul.addr %s338, 8
          %s340 = scalar_lea.vmem %s3, %s339
        $region52: #{tpu_custom_call.1} parent=35 // pred_fallthru
          _
      $region36: #{tpu_custom_call.1} parent=5 // pred_fallthru
        _
      %p341 = scmp.le.s32.totalorder 1, %s18
      %p342 = scmp.lt.s32.totalorder %s18, 3
      %p343 = pnand %p341, %p342
      %p344 = pneg %p343
      // Predicated region
      $region53: #{tpu_custom_call.1} parent=5 // pred_check
        _
      $region54: #{tpu_custom_call.1} parent=5 // pred_check_branch
        %346 = sbr.rel (%p343) target = $region56
      $region55: #{tpu_custom_call.1} parent=5 // pred_region
        %s347 = ssub.s32 %s18, 1
        %p348 = scmp.lt.s32.totalorder %s27, 1
        %s349 = scalar_select %p348, %s27, 1
        %p350 = scmp.lt.s32.totalorder %s28, 0
        %s351 = scalar_select %p350, %s28, 0
        %s352 = sadd.s32 %s351, %s349
        %s353 = smul.addr %s352, 4
        %s354 = scalar_lea.vmem %s0, %s353
        %p355 = pneg %p58
        %p356 = pneg %p55
        %p357 = scmp.lt.s32.totalorder %s27, 1
        %s358 = scalar_select %p357, %s27, 1
        %s359 = smul.addr %s358, 8
        %s360 = scalar_lea.vmem %s1, %s359
        %p361 = pneg %p84
        %p362 = pneg %p81
        %p363 = scmp.lt.s32.totalorder %s27, 1
        %s364 = scalar_select %p363, %s27, 1
        %p365 = scmp.lt.s32.totalorder %s28, 0
        %s366 = scalar_select %p365, %s28, 0
        %s367 = smul.addr %s364, 2
        %s368 = sadd.s32 %s366, %s367
        %s369 = smul.addr %s368, 8
        %s370 = scalar_lea.vmem %s2, %s369
        %p371 = pneg %p112
        %p372 = pneg %p109
        %p373 = scmp.lt.s32.totalorder %s27, 1
        %s374 = scalar_select %p373, %s27, 1
        %s375 = smul.addr %s374, 4
        %s376 = smul.addr %s375, 8
        %s377 = scalar_lea.vmem %s3, %s376
        %p378 = pneg %p138
        %p379 = pneg %p135
        %p380 = pneg %p159
        %p381 = pneg %p156
        %p382 = pneg %p180
        %p383 = pneg %p177
        %p384 = pneg %p201
        %p385 = pneg %p198
        %p386 = pneg %p222
        %p387 = pneg %p219
        %p388 = pneg %p243
        %p389 = pneg %p240
        %p390 = pneg %p271
        %p391 = pneg %p268
        %s392 = sand.u32 %s258, 1
        %s393 = scalar_lea.sflag [#allocation3], %s392
        %s394 = sand.u32 %s258, 1
        %s395 = smul.addr %s394, 16
        %s396 = scalar_lea.vmem [#allocation2], %s395
        %p397 = scmp.lt.s32.totalorder %s27, 1
        %s398 = scalar_select %p397, %s27, 1
        %p399 = scmp.lt.s32.totalorder %s28, 0
        %s400 = scalar_select %p399, %s28, 0
        %s401 = sadd.s32 %s400, %s398
        %s402 = smul.addr %s401, 4
        %s403 = scalar_lea.vmem %s0, %s402
        %p404 = scmp.lt.s32.totalorder %s27, 1
        %s405 = scalar_select %p404, %s27, 1
        %s406 = smul.addr %s405, 8
        %s407 = scalar_lea.vmem %s1, %s406
        %p408 = scmp.lt.s32.totalorder %s27, 1
        %s409 = scalar_select %p408, %s27, 1
        %p410 = scmp.lt.s32.totalorder %s28, 0
        %s411 = scalar_select %p410, %s28, 0
        %s412 = smul.addr %s409, 2
        %s413 = sadd.s32 %s411, %s412
        %s414 = smul.addr %s413, 8
        %s415 = scalar_lea.vmem %s2, %s414
        %p416 = scmp.lt.s32.totalorder %s27, 1
        %s417 = scalar_select %p416, %s27, 1
        %s418 = smul.addr %s417, 4
        %s419 = smul.addr %s418, 8
        %s420 = scalar_lea.vmem %s3, %s419
        %v421 = vld [vmem:[%s420] sm:$0xff]
        %v422 = vld [vmem:[%s420 + $0x8] sm:$0xff]
        %v423 = vld [vmem:[%s420 + $0x10] sm:$0xff]
        %v424 = vld [vmem:[%s420 + $0x18] sm:$0xff]
        %v425 = vld [vmem:[%s403] sm:$0x7]
        %v426 = vld [vmem:[%s407] sm:$0xff]
        %428 = vset.pattern.permute.xlu0 0
        %429 = vperm.xlu0 %428, %v426
        %v430 = vpop.permute.xlu0 %429
        %v432 = vlaneseq
        %v433 = vshrl.u32 %v432, 7
        %v434 = vsub.s32 0, %v433
        %v435 = vrot.slane %v425, %v434
        %v436 = vsub.f32 %v430, %v435
        %v437 = vmul.f32 %v436, %v436
        %438 = vset.pattern.permute.xlu0 1
        %439 = vperm.xlu0 %438, %v426
        %v440 = vpop.permute.xlu0 %439
        %v442 = vlaneseq
        %v443 = vshrl.u32 %v442, 7
        %v444 = vsub.s32 1, %v443
        %v445 = vrot.slane %v425, %v444
        %v446 = vsub.f32 %v440, %v445
        %v447 = vmul.f32 %v446, %v446
        %v448 = vadd.f32 %v437, %v447
        %449 = vset.pattern.permute.xlu0 2
        %450 = vperm.xlu0 %449, %v426
        %v451 = vpop.permute.xlu0 %450
        %v453 = vlaneseq
        %v454 = vshrl.u32 %v453, 7
        %v455 = vsub.s32 2, %v454
        %v456 = vrot.slane %v425, %v455
        %v457 = vsub.f32 %v451, %v456
        %v458 = vmul.f32 %v457, %v457
        %v459 = vadd.f32 %v448, %v458
        %v460 = vlaneseq
        %v461 = vshrl.u32 %v460, 7
        %v462 = vrot.slane %v459, 4
        %v463 = vmin.f32 %v459, %v462
        %v464 = vrot.slane %v463, 2
        %v465 = vmin.f32 %v463, %v464
        %v466 = vrot.slane %v465, 1
        %v467 = vmin.f32 %v465, %v466
        %vm468 = vcmp.eq.f32.partialorder %v459, %v467
        %v469 = vsel %vm468, %v461, 8
        %v470 = vrot.slane %v469, 4
        %vm471 = vcmp.lt.s32.totalorder %v469, %v470
        %v472 = vsel %vm471, %v469, %v470
        %v473 = vrot.slane %v472, 2
        %vm474 = vcmp.lt.s32.totalorder %v472, %v473
        %v475 = vsel %vm474, %v472, %v473
        %v476 = vrot.slane %v475, 1
        %vm477 = vcmp.lt.s32.totalorder %v475, %v476
        %v478 = vsel %vm477, %v475, %v476
        %vm479 = vcmp.eq.s32.totalorder %v461, %v478
        %v480 = vadd.f32 %v467, 1e-08
        %v481 = vrcp.pop %v480
        %v482 = vmul.f32 1.0, %v481
        %v483 = vsel %vm479, 1e+30, %v459
        %v484 = vrot.slane %v483, 4
        %v485 = vmin.f32 %v483, %v484
        %v486 = vrot.slane %v485, 2
        %v487 = vmin.f32 %v485, %v486
        %v488 = vrot.slane %v487, 1
        %v489 = vmin.f32 %v487, %v488
        %vm490 = vcmp.eq.f32.partialorder %v483, %v489
        %v491 = vsel %vm490, %v461, 8
        %v492 = vrot.slane %v491, 4
        %vm493 = vcmp.lt.s32.totalorder %v491, %v492
        %v494 = vsel %vm493, %v491, %v492
        %v495 = vrot.slane %v494, 2
        %vm496 = vcmp.lt.s32.totalorder %v494, %v495
        %v497 = vsel %vm496, %v494, %v495
        %v498 = vrot.slane %v497, 1
        %vm499 = vcmp.lt.s32.totalorder %v497, %v498
        %v500 = vsel %vm499, %v497, %v498
        %vm501 = vcmp.eq.s32.totalorder %v461, %v500
        %v502 = vadd.f32 %v489, 1e-08
        %v503 = vrcp.pop %v502
        %v504 = vmul.f32 1.0, %v503
        %v505 = vsel %vm501, 1e+30, %v483
        %v506 = vrot.slane %v505, 4
        %v507 = vmin.f32 %v505, %v506
        %v508 = vrot.slane %v507, 2
        %v509 = vmin.f32 %v507, %v508
        %v510 = vrot.slane %v509, 1
        %v511 = vmin.f32 %v509, %v510
        %vm512 = vcmp.eq.f32.partialorder %v505, %v511
        %v513 = vsel %vm512, %v461, 8
        %v514 = vrot.slane %v513, 4
        %vm515 = vcmp.lt.s32.totalorder %v513, %v514
        %v516 = vsel %vm515, %v513, %v514
        %v517 = vrot.slane %v516, 2
        %vm518 = vcmp.lt.s32.totalorder %v516, %v517
        %v519 = vsel %vm518, %v516, %v517
        %v520 = vrot.slane %v519, 1
        %vm521 = vcmp.lt.s32.totalorder %v519, %v520
        %v522 = vsel %vm521, %v519, %v520
        %vm523 = vcmp.eq.s32.totalorder %v461, %v522
        %v524 = vadd.f32 %v511, 1e-08
        %v525 = vrcp.pop %v524
        %v526 = vmul.f32 1.0, %v525
        %v527 = vadd.f32 %v482, %v504
        %v528 = vadd.f32 %v527, %v526
        %v529 = vrcp.pop %v528
        %v530 = vmul.f32 1.0, %v529
        %v531 = vmul.f32 %v482, %v530
        %v532 = vsel %vm479, %v531, 0.0
        %v533 = vmul.f32 %v504, %v530
        %v534 = vsel %vm501, %v533, 0.0
        %v535 = vadd.f32 %v532, %v534
        %v536 = vmul.f32 %v526, %v530
        %v537 = vsel %vm523, %v536, 0.0
        %v538 = vadd.f32 %v535, %v537
        %vm539 = vcmask 64512
        %v541 = vsel %vm539, %v421, 0
        %v544 = vsel %vm539, %v422, 0
        %v547 = vsel %vm539, %v423, 0
        %v550 = vsel %vm539, %v424, 0
        %552 = vmatprep.subr.mxu0 0.0
        %553 = vmatpush1.msra.mxu0 %v538
        %554 = vmatprep.subr.mxu0 0.0
        %555 = vmatpush1.msra.mxu0 0.0
        %556 = vmatprep.subr.mxu0 0.0
        %557 = vmatpush1.msra.mxu0 0.0
        %558 = vmatprep.subr.mxu0 0.0
        %559 = vmatpush1.msra.mxu0 0.0
        %560 = vmatprep.subr.mxu0 0.0
        %561 = vmatpush1.msra.mxu0 0.0
        %562 = vmatprep.subr.mxu0 0.0
        %563 = vmatpush1.msra.mxu0 0.0
        %564 = vmatprep.subr.mxu0 0.0
        %565 = vmatpush1.msra.mxu0 0.0
        %566 = vmatprep.subr.mxu0 0.0
        %567 = vmatpush1.msra.mxu0 0.0
        %568 = vmatprep.subr.mxu0 0.0
        %569 = vmatpush1.msra.mxu0 0.0
        %570 = vmatprep.subr.mxu0 0.0
        %571 = vmatpush1.msra.mxu0 0.0
        %572 = vmatprep.subr.mxu0 0.0
        %573 = vmatpush1.msra.mxu0 0.0
        %574 = vmatprep.subr.mxu0 0.0
        %575 = vmatpush1.msra.mxu0 0.0
        %576 = vmatprep.subr.mxu0 0.0
        %577 = vmatpush1.msra.mxu0 0.0
        %578 = vmatprep.subr.mxu0 0.0
        %579 = vmatpush1.msra.mxu0 0.0
        %580 = vmatprep.subr.mxu0 0.0
        %581 = vmatpush1.msra.mxu0 0.0
        %582 = vmatprep.subr.mxu0 0.0
        %583 = vmatpush1.msra.mxu0 0.0
        %584 = vmatprep.subr.mxu0 0.0
        %585 = vmatpush1.msra.mxu0 0.0
        %586 = vmatprep.subr.mxu0 0.0
        %587 = vmatpush1.msra.mxu0 0.0
        %588 = vmatprep.subr.mxu0 0.0
        %589 = vmatpush1.msra.mxu0 0.0
        %590 = vmatprep.subr.mxu0 0.0
        %591 = vmatpush1.msra.mxu0 0.0
        %592 = vmatprep.subr.mxu0 0.0
        %593 = vmatpush1.msra.mxu0 0.0
        %594 = vmatprep.subr.mxu0 0.0
        %595 = vmatpush1.msra.mxu0 0.0
        %596 = vmatprep.subr.mxu0 0.0
        %597 = vmatpush1.msra.mxu0 0.0
        %598 = vmatprep.subr.mxu0 0.0
        %599 = vmatpush1.msra.mxu0 0.0
        %600 = vmatprep.subr.mxu0 0.0
        %601 = vmatpush1.msra.mxu0 0.0
        %602 = vmatprep.subr.mxu0 0.0
        %603 = vmatpush1.msra.mxu0 0.0
        %604 = vmatprep.subr.mxu0 0.0
        %605 = vmatpush1.msra.mxu0 0.0
        %606 = vmatprep.subr.mxu0 0.0
        %607 = vmatpush1.msra.mxu0 0.0
        %608 = vmatprep.subr.mxu0 0.0
        %609 = vmatpush1.msra.mxu0 0.0
        %610 = vmatprep.subr.mxu0 0.0
        %611 = vmatpush1.msra.mxu0 0.0
        %612 = vmatprep.subr.mxu0 0.0
        %613 = vmatpush1.msra.mxu0 0.0
        %614 = vmatprep.subr.mxu0 0.0
        %615 = vmatpush1.msra.mxu0 0.0
        %616 = vmatprep.mubr.f32.mxu0 0.0
        %617 = vmatmul.mubr.f32.gmra.mrb[0].mxu0 %v541
        %v618 = vpop.f32.mrb[0].mxu0
        %v619 = vadd.f32 0.0, %v618
        %v620 = vpop.f32.mrb[0].mxu0
        %621 = vmatprep.mubr.f32.mxu0 0.0
        %622 = vmatmul.mubr.f32.gmra.mrb[0].mxu0 %v544
        %v623 = vpop.f32.mrb[0].mxu0
        %v624 = vadd.f32 0.0, %v623
        %v625 = vpop.f32.mrb[0].mxu0
        %626 = vmatprep.mubr.f32.mxu0 0.0
        %627 = vmatmul.mubr.f32.gmra.mrb[0].mxu0 %v547
        %v628 = vpop.f32.mrb[0].mxu0
        %v629 = vadd.f32 0.0, %v628
        %v630 = vpop.f32.mrb[0].mxu0
        %631 = vmatprep.mubr.f32.mxu0 0.0
        %632 = vmatmul.mubr.f32.gmra.mrb[0].mxu0 %v550
        %v633 = vpop.f32.mrb[0].mxu0
        %v634 = vadd.f32 0.0, %v633
        %v635 = vpop.f32.mrb[0].mxu0
        %636 = vdwg.mxu0
        %v637 = vld [vmem:[%s4] sm:$0xff]
        %v638 = vld [vmem:[%s4 + $0x8] sm:$0xff]
        %v639 = vld [vmem:[%s4 + $0x10] sm:$0xff]
        %v640 = vld [vmem:[%s4 + $0x18] sm:$0xff]
        %v641 = vld [vmem:[%s5] sm:$0xff]
        %v642 = vld [vmem:[%s5 + $0x8] sm:$0xff]
        %v643 = vld [vmem:[%s5 + $0x10] sm:$0xff]
        %v644 = vld [vmem:[%s5 + $0x18] sm:$0xff]
        %v645 = vld [vmem:[%s6] sm:$0xff]
        %v646 = vld [vmem:[%s6 + $0x8] sm:$0xff]
        %v647 = vld [vmem:[%s6 + $0x10] sm:$0xff]
        %v648 = vld [vmem:[%s6 + $0x18] sm:$0xff]
        %v649 = vld [vmem:[%s415] sm:$0xff]
        %v650 = vld [vmem:[%s415 + $0x8] sm:$0xff]
        %vm651 = vcmask 130048
        %v653 = vsel %vm651, %v637, 0
        %v656 = vsel %vm651, %v638, 0
        %v659 = vsel %vm651, %v639, 0
        %v662 = vsel %vm651, %v640, 0
        %664 = vmatprep.subr.mxu0 0.0
        %665 = vmatpush1.msra.mxu0 %v649
        %666 = vmatprep.subr.mxu0 0.0
        %667 = vmatpush1.msra.mxu0 %v650
        %668 = vmatprep.subr.mxu0 0.0
        %669 = vmatpush1.msra.mxu0 0.0
        %670 = vmatprep.subr.mxu0 0.0
        %671 = vmatpush1.msra.mxu0 0.0
        %672 = vmatprep.subr.mxu0 0.0
        %673 = vmatpush1.msra.mxu0 0.0
        %674 = vmatprep.subr.mxu0 0.0
        %675 = vmatpush1.msra.mxu0 0.0
        %676 = vmatprep.subr.mxu0 0.0
        %677 = vmatpush1.msra.mxu0 0.0
        %678 = vmatprep.subr.mxu0 0.0
        %679 = vmatpush1.msra.mxu0 0.0
        %680 = vmatprep.subr.mxu0 0.0
        %681 = vmatpush1.msra.mxu0 0.0
        %682 = vmatprep.subr.mxu0 0.0
        %683 = vmatpush1.msra.mxu0 0.0
        %684 = vmatprep.subr.mxu0 0.0
        %685 = vmatpush1.msra.mxu0 0.0
        %686 = vmatprep.subr.mxu0 0.0
        %687 = vmatpush1.msra.mxu0 0.0
        %688 = vmatprep.subr.mxu0 0.0
        %689 = vmatpush1.msra.mxu0 0.0
        %690 = vmatprep.subr.mxu0 0.0
        %691 = vmatpush1.msra.mxu0 0.0
        %692 = vmatprep.subr.mxu0 0.0
        %693 = vmatpush1.msra.mxu0 0.0
        %694 = vmatprep.subr.mxu0 0.0
        %695 = vmatpush1.msra.mxu0 0.0
        %696 = vmatprep.subr.mxu0 0.0
        %697 = vmatpush1.msra.mxu0 0.0
        %698 = vmatprep.subr.mxu0 0.0
        %699 = vmatpush1.msra.mxu0 0.0
        %700 = vmatprep.subr.mxu0 0.0
        %701 = vmatpush1.msra.mxu0 0.0
        %702 = vmatprep.subr.mxu0 0.0
        %703 = vmatpush1.msra.mxu0 0.0
        %704 = vmatprep.subr.mxu0 0.0
        %705 = vmatpush1.msra.mxu0 0.0
        %706 = vmatprep.subr.mxu0 0.0
        %707 = vmatpush1.msra.mxu0 0.0
        %708 = vmatprep.subr.mxu0 0.0
        %709 = vmatpush1.msra.mxu0 0.0
        %710 = vmatprep.subr.mxu0 0.0
        %711 = vmatpush1.msra.mxu0 0.0
        %712 = vmatprep.subr.mxu0 0.0
        %713 = vmatpush1.msra.mxu0 0.0
        %714 = vmatprep.subr.mxu0 0.0
        %715 = vmatpush1.msra.mxu0 0.0
        %716 = vmatprep.subr.mxu0 0.0
        %717 = vmatpush1.msra.mxu0 0.0
        %718 = vmatprep.subr.mxu0 0.0
        %719 = vmatpush1.msra.mxu0 0.0
        %720 = vmatprep.subr.mxu0 0.0
        %721 = vmatpush1.msra.mxu0 0.0
        %722 = vmatprep.subr.mxu0 0.0
        %723 = vmatpush1.msra.mxu0 0.0
        %724 = vmatprep.subr.mxu0 0.0
        %725 = vmatpush1.msra.mxu0 0.0
        %726 = vmatprep.subr.mxu0 0.0
        %727 = vmatpush1.msra.mxu0 0.0
        %728 = vmatprep.mubr.f32.mxu0 0.0
        %729 = vmatmul.mubr.f32.gmra.mrb[0].mxu0 %v653
        %v730 = vpop.f32.mrb[0].mxu0
        %v731 = vadd.f32 0.0, %v730
        %v732 = vpop.f32.mrb[0].mxu0
        %733 = vmatprep.mubr.f32.mxu0 0.0
        %734 = vmatmul.mubr.f32.gmra.mrb[0].mxu0 %v656
        %v735 = vpop.f32.mrb[0].mxu0
        %v736 = vadd.f32 0.0, %v735
        %v737 = vpop.f32.mrb[0].mxu0
        %738 = vmatprep.mubr.f32.mxu0 0.0
        %739 = vmatmul.mubr.f32.gmra.mrb[0].mxu0 %v659
        %v740 = vpop.f32.mrb[0].mxu0
        %v741 = vadd.f32 0.0, %v740
        %v742 = vpop.f32.mrb[0].mxu0
        %743 = vmatprep.mubr.f32.mxu0 0.0
        %744 = vmatmul.mubr.f32.gmra.mrb[0].mxu0 %v662
        %v745 = vpop.f32.mrb[0].mxu0
        %v746 = vadd.f32 0.0, %v745
        %v747 = vpop.f32.mrb[0].mxu0
        %748 = vdwg.mxu0
        %vm749 = vcmask 261120
        %v751 = vsel %vm749, %v641, 0
        %v754 = vsel %vm749, %v642, 0
        %v757 = vsel %vm749, %v643, 0
        %v760 = vsel %vm749, %v644, 0
        %762 = vmatprep.subr.mxu0 0.0
        %763 = vmatpush1.msra.mxu0 %v619
        %764 = vmatprep.subr.mxu0 0.0
        %765 = vmatpush1.msra.mxu0 %v624
        %766 = vmatprep.subr.mxu0 0.0
        %767 = vmatpush1.msra.mxu0 %v629
        %768 = vmatprep.subr.mxu0 0.0
        %769 = vmatpush1.msra.mxu0 %v634
        %770 = vmatprep.subr.mxu0 0.0
        %771 = vmatpush1.msra.mxu0 0.0
        %772 = vmatprep.subr.mxu0 0.0
        %773 = vmatpush1.msra.mxu0 0.0
        %774 = vmatprep.subr.mxu0 0.0
        %775 = vmatpush1.msra.mxu0 0.0
        %776 = vmatprep.subr.mxu0 0.0
        %777 = vmatpush1.msra.mxu0 0.0
        %778 = vmatprep.subr.mxu0 0.0
        %779 = vmatpush1.msra.mxu0 0.0
        %780 = vmatprep.subr.mxu0 0.0
        %781 = vmatpush1.msra.mxu0 0.0
        %782 = vmatprep.subr.mxu0 0.0
        %783 = vmatpush1.msra.mxu0 0.0
        %784 = vmatprep.subr.mxu0 0.0
        %785 = vmatpush1.msra.mxu0 0.0
        %786 = vmatprep.subr.mxu0 0.0
        %787 = vmatpush1.msra.mxu0 0.0
        %788 = vmatprep.subr.mxu0 0.0
        %789 = vmatpush1.msra.mxu0 0.0
        %790 = vmatprep.subr.mxu0 0.0
        %791 = vmatpush1.msra.mxu0 0.0
        %792 = vmatprep.subr.mxu0 0.0
        %793 = vmatpush1.msra.mxu0 0.0
        %794 = vmatprep.subr.mxu0 0.0
        %795 = vmatpush1.msra.mxu0 0.0
        %796 = vmatprep.subr.mxu0 0.0
        %797 = vmatpush1.msra.mxu0 0.0
        %798 = vmatprep.subr.mxu0 0.0
        %799 = vmatpush1.msra.mxu0 0.0
        %800 = vmatprep.subr.mxu0 0.0
        %801 = vmatpush1.msra.mxu0 0.0
        %802 = vmatprep.subr.mxu0 0.0
        %803 = vmatpush1.msra.mxu0 0.0
        %804 = vmatprep.subr.mxu0 0.0
        %805 = vmatpush1.msra.mxu0 0.0
        %806 = vmatprep.subr.mxu0 0.0
        %807 = vmatpush1.msra.mxu0 0.0
        %808 = vmatprep.subr.mxu0 0.0
        %809 = vmatpush1.msra.mxu0 0.0
        %810 = vmatprep.subr.mxu0 0.0
        %811 = vmatpush1.msra.mxu0 0.0
        %812 = vmatprep.subr.mxu0 0.0
        %813 = vmatpush1.msra.mxu0 0.0
        %814 = vmatprep.subr.mxu0 0.0
        %815 = vmatpush1.msra.mxu0 0.0
        %816 = vmatprep.subr.mxu0 0.0
        %817 = vmatpush1.msra.mxu0 0.0
        %818 = vmatprep.subr.mxu0 0.0
        %819 = vmatpush1.msra.mxu0 0.0
        %820 = vmatprep.subr.mxu0 0.0
        %821 = vmatpush1.msra.mxu0 0.0
        %822 = vmatprep.subr.mxu0 0.0
        %823 = vmatpush1.msra.mxu0 0.0
        %824 = vmatprep.subr.mxu0 0.0
        %825 = vmatpush1.msra.mxu0 0.0
        %826 = vmatprep.mubr.f32.mxu0 0.0
        %827 = vmatmul.mubr.f32.gmra.mrb[0].mxu0 %v751
        %v828 = vpop.f32.mrb[0].mxu0
        %v829 = vadd.f32 %v731, %v828
        %v830 = vpop.f32.mrb[0].mxu0
        %831 = vmatprep.mubr.f32.mxu0 0.0
        %832 = vmatmul.mubr.f32.gmra.mrb[0].mxu0 %v754
        %v833 = vpop.f32.mrb[0].mxu0
        %v834 = vadd.f32 %v736, %v833
        %v835 = vpop.f32.mrb[0].mxu0
        %836 = vmatprep.mubr.f32.mxu0 0.0
        %837 = vmatmul.mubr.f32.gmra.mrb[0].mxu0 %v757
        %v838 = vpop.f32.mrb[0].mxu0
        %v839 = vadd.f32 %v741, %v838
        %v840 = vpop.f32.mrb[0].mxu0
        %841 = vmatprep.mubr.f32.mxu0 0.0
        %842 = vmatmul.mubr.f32.gmra.mrb[0].mxu0 %v760
        %v843 = vpop.f32.mrb[0].mxu0
        %v844 = vadd.f32 %v746, %v843
        %v845 = vpop.f32.mrb[0].mxu0
        %846 = vdwg.mxu0
        %848 = vset.pattern.permute.xlu0 0
        %849 = vperm.xlu0 %848, %v645
        %v850 = vpop.permute.xlu0 %849
        %853 = vset.pattern.permute.xlu0 0
        %854 = vperm.xlu0 %853, %v646
        %v855 = vpop.permute.xlu0 %854
        %858 = vset.pattern.permute.xlu0 0
        %859 = vperm.xlu0 %858, %v647
        %v860 = vpop.permute.xlu0 %859
        %863 = vset.pattern.permute.xlu0 0
        %864 = vperm.xlu0 %863, %v648
        %v865 = vpop.permute.xlu0 %864
        %v867 = vadd.f32 %v829, %v850
        %v868 = vadd.f32 %v834, %v855
        %v869 = vadd.f32 %v839, %v860
        %v870 = vadd.f32 %v844, %v865
        %v871 = vmax.f32 %v867, 0.0
        %v872 = vmax.f32 %v868, 0.0
        %v873 = vmax.f32 %v869, 0.0
        %v874 = vmax.f32 %v870, 0.0
        %v875 = vld [vmem:[%s7] sm:$0xff]
        %v876 = vld [vmem:[%s7 + $0x8] sm:$0xff]
        %v877 = vld [vmem:[%s8] sm:$0xff]
        %v878 = vld [vmem:[%s8 + $0x8] sm:$0xff]
        %880 = vset.pattern.permute.xlu0 0
        %881 = vperm.xlu0 %880, %v877
        %v882 = vpop.permute.xlu0 %881
        %885 = vset.pattern.permute.xlu0 0
        %886 = vperm.xlu0 %885, %v878
        %v887 = vpop.permute.xlu0 %886
        %v890 = vsel %vm749, %v875, 0
        %v893 = vsel %vm749, %v876, 0
        %895 = vmatprep.subr.mxu0 0.0
        %896 = vmatpush1.msra.mxu0 %v871
        %897 = vmatprep.subr.mxu0 0.0
        %898 = vmatpush1.msra.mxu0 %v872
        %899 = vmatprep.subr.mxu0 0.0
        %900 = vmatpush1.msra.mxu0 %v873
        %901 = vmatprep.subr.mxu0 0.0
        %902 = vmatpush1.msra.mxu0 %v874
        %903 = vmatprep.subr.mxu0 0.0
        %904 = vmatpush1.msra.mxu0 0.0
        %905 = vmatprep.subr.mxu0 0.0
        %906 = vmatpush1.msra.mxu0 0.0
        %907 = vmatprep.subr.mxu0 0.0
        %908 = vmatpush1.msra.mxu0 0.0
        %909 = vmatprep.subr.mxu0 0.0
        %910 = vmatpush1.msra.mxu0 0.0
        %911 = vmatprep.subr.mxu0 0.0
        %912 = vmatpush1.msra.mxu0 0.0
        %913 = vmatprep.subr.mxu0 0.0
        %914 = vmatpush1.msra.mxu0 0.0
        %915 = vmatprep.subr.mxu0 0.0
        %916 = vmatpush1.msra.mxu0 0.0
        %917 = vmatprep.subr.mxu0 0.0
        %918 = vmatpush1.msra.mxu0 0.0
        %919 = vmatprep.subr.mxu0 0.0
        %920 = vmatpush1.msra.mxu0 0.0
        %921 = vmatprep.subr.mxu0 0.0
        %922 = vmatpush1.msra.mxu0 0.0
        %923 = vmatprep.subr.mxu0 0.0
        %924 = vmatpush1.msra.mxu0 0.0
        %925 = vmatprep.subr.mxu0 0.0
        %926 = vmatpush1.msra.mxu0 0.0
        %927 = vmatprep.subr.mxu0 0.0
        %928 = vmatpush1.msra.mxu0 0.0
        %929 = vmatprep.subr.mxu0 0.0
        %930 = vmatpush1.msra.mxu0 0.0
        %931 = vmatprep.subr.mxu0 0.0
        %932 = vmatpush1.msra.mxu0 0.0
        %933 = vmatprep.subr.mxu0 0.0
        %934 = vmatpush1.msra.mxu0 0.0
        %935 = vmatprep.subr.mxu0 0.0
        %936 = vmatpush1.msra.mxu0 0.0
        %937 = vmatprep.subr.mxu0 0.0
        %938 = vmatpush1.msra.mxu0 0.0
        %939 = vmatprep.subr.mxu0 0.0
        %940 = vmatpush1.msra.mxu0 0.0
        %941 = vmatprep.subr.mxu0 0.0
        %942 = vmatpush1.msra.mxu0 0.0
        %943 = vmatprep.subr.mxu0 0.0
        %944 = vmatpush1.msra.mxu0 0.0
        %945 = vmatprep.subr.mxu0 0.0
        %946 = vmatpush1.msra.mxu0 0.0
        %947 = vmatprep.subr.mxu0 0.0
        %948 = vmatpush1.msra.mxu0 0.0
        %949 = vmatprep.subr.mxu0 0.0
        %950 = vmatpush1.msra.mxu0 0.0
        %951 = vmatprep.subr.mxu0 0.0
        %952 = vmatpush1.msra.mxu0 0.0
        %953 = vmatprep.subr.mxu0 0.0
        %954 = vmatpush1.msra.mxu0 0.0
        %955 = vmatprep.subr.mxu0 0.0
        %956 = vmatpush1.msra.mxu0 0.0
        %957 = vmatprep.subr.mxu0 0.0
        %958 = vmatpush1.msra.mxu0 0.0
        %959 = vmatprep.mubr.f32.mxu0 0.0
        %960 = vmatmul.mubr.f32.gmra.mrb[0].mxu0 %v890
        %v961 = vpop.f32.mrb[0].mxu0
        %v962 = vadd.f32 %v882, %v961
        %v963 = vpop.f32.mrb[0].mxu0
        %964 = vmatprep.mubr.f32.mxu0 0.0
        %965 = vmatmul.mubr.f32.gmra.mrb[0].mxu0 %v893
        %v966 = vpop.f32.mrb[0].mxu0
        %v967 = vadd.f32 %v887, %v966
        %v968 = vpop.f32.mrb[0].mxu0
        %969 = vdwg.mxu0
        %v970 = vmax.f32 %v962, 0.0
        %v971 = vmax.f32 %v967, 0.0
        %972 = vst [vmem:[%s396] sm:$0xff] %v970
        %973 = vst [vmem:[%s396 + $0x8] sm:$0xff] %v971
        %s974 = sand.u32 %s258, 1
        %s975 = scalar_lea.sflag [#allocation3], %s974
        %s976 = sand.u32 %s258, 1
        %s977 = smul.addr %s976, 16
        %s978 = scalar_lea.vmem [#allocation2], %s977
        // Predicated region
        $region57: #{tpu_custom_call.1} parent=55 // pred_check
          %p979 = pneg %p268
        $region58: #{tpu_custom_call.1} parent=55 // pred_check_branch
          %981 = sbr.rel (%p979) target = $region60
        $region59: #{tpu_custom_call.1} parent=55 // pred_region
          %s983 = ssub.s32 256, 256
          %984 = vsyncadd %s975, %s983
          %s985 = smul.addr %s27, 2
          %s986 = sadd.s32 %s28, %s985
          %s987 = smul.addr %s986, 128
          %s988 = scalar_lea.hbm %s9, %s987
          %s989 = sshll.u32 %s978, 4
          %s990 = int_to_ptr.vmem [resolvable:$true] %s989
          %995 = dma.vmem_to_hbm [thread:$0]  %s990, 256, %s988, %s975, 128, 128, 8
        $region60: #{tpu_custom_call.1} parent=55 // pred_fallthru
          _
      $region56: #{tpu_custom_call.1} parent=5 // pred_fallthru
        _
      %p996 = scmp.le.s32.totalorder 2, %s18
      // Predicated region
      $region61: #{tpu_custom_call.1} parent=5 // pred_check
        %p997 = pneg %p996
      $region62: #{tpu_custom_call.1} parent=5 // pred_check_branch
        %999 = sbr.rel (%p997) target = $region64
      $region63: #{tpu_custom_call.1} parent=5 // pred_region
        %s1000 = ssub.s32 %s18, 2
        // Predicated region
        $region65: #{tpu_custom_call.1} parent=63 // pred_check
          %p1001 = pneg %p274
        $region66: #{tpu_custom_call.1} parent=63 // pred_check_branch
          %1003 = sbr.rel (%p1001) target = $region68
        $region67: #{tpu_custom_call.1} parent=63 // pred_region
          %s1004 = sand.u32 %s259, 1
          %s1005 = scalar_lea.sflag [#allocation3], %s1004
          %s1006 = sand.u32 %s259, 1
          %s1007 = smul.addr %s1006, 16
          %s1008 = scalar_lea.vmem [#allocation2], %s1007
          %1009 = dma.done %s1005, 256
        $region68: #{tpu_custom_call.1} parent=63 // pred_fallthru
          _
      $region64: #{tpu_custom_call.1} parent=5 // pred_fallthru
        _
    $region6: #{tpu_custom_call.1} parent=1 // loop_footer
      %s22 = sadd.s32 1, %s18
    $region7: #{tpu_custom_call.1} parent=1 // loop_footer_branch
      %17 = sbr.rel target = $region3
    $region8: #{tpu_custom_call.1} parent=1 // loop_exit
      _
    %1010 = vsyncpa [#allocation3], 1
    %s1011 = scalar_lea.sflag [#allocation3], 1
    %1012 = vsyncpa %s1011, 1

</llo_original>
